<compile_context>
chip_gen: v5e
topology: v5e:2x2
jax: 0.10.0
libtpu: 0.0.40
codegen_flags: <defaults>
</compile_context>

<pallas_src>
import functools
import math

import jax
import jax.numpy as jnp
import numpy as np
from jax import lax
from jax.experimental import pallas as pl
from jax.experimental.pallas import tpu as pltpu


# ----------------------------------------------------------------------------
# Tiling helper
# ----------------------------------------------------------------------------
def _pick_tile(dim, cap, base):
    """Largest tile <= cap that divides `dim` and is a multiple of `base`.

    Falls back to the full dim, which is always layout-legal ("full array dim"
    escape hatch of the (8,128) tiling rule)."""
    if dim <= cap:
        return dim
    t = max((cap // base) * base, base)
    while t > base and dim % t != 0:
        t -= base
    return t if (t > 0 and dim % t == 0) else dim


# ----------------------------------------------------------------------------
# Tiled linear:  y = x @ w_t   (w_t is the transposed nn.Linear weight, bf16)
# ----------------------------------------------------------------------------
def _linear_kernel(x_ref, w_ref, o_ref, acc_ref):
    @pl.when(pl.program_id(2) == 0)
    def _():
        acc_ref[...] = jnp.zeros(acc_ref.shape, acc_ref.dtype)

    # bf16 into the MXU, f32 accumulation.
    acc_ref[...] += jnp.dot(
        x_ref[...].astype(jnp.bfloat16),
        w_ref[...],
        preferred_element_type=jnp.float32,
    )

    @pl.when(pl.program_id(2) == pl.num_programs(2) - 1)
    def _():
        o_ref[...] = acc_ref[...].astype(o_ref.dtype)


def pallas_linear(x2d, w_t, *, tm_cap=256, tn_cap=256, tk_cap=512):
    M, K = x2d.shape
    K2, N = w_t.shape
    assert K == K2
    tm = _pick_tile(M, tm_cap, 8)
    tn = _pick_tile(N, tn_cap, 128)
    tk = _pick_tile(K, tk_cap, 128)
    assert M % tm == 0 and N % tn == 0 and K % tk == 0
    grid = (M // tm, N // tn, K // tk)
    return pl.pallas_call(
        _linear_kernel,
        out_shape=jax.ShapeDtypeStruct((M, N), jnp.float32),
        grid=grid,
        in_specs=[
            pl.BlockSpec((tm, tk), lambda i, j, k: (i, k)),
            pl.BlockSpec((tk, tn), lambda i, j, k: (k, j)),
        ],
        out_specs=pl.BlockSpec((tm, tn), lambda i, j, k: (i, j)),
        scratch_shapes=[pltpu.VMEM((tm, tn), jnp.float32)],
        compiler_params=pltpu.CompilerParams(
            dimension_semantics=("parallel", "parallel", "arbitrary"),
            vmem_limit_bytes=32 * 1024 * 1024,
        ),
        cost_estimate=pl.CostEstimate(
            flops=2 * M * N * K,
            transcendentals=0,
            bytes_accessed=int(
                M * K * x2d.dtype.itemsize + K * N * w_t.dtype.itemsize + M * N * 4
            ),
        ),
    )(x2d, w_t)


# ----------------------------------------------------------------------------
# RoPE kernel: lane-dense over Hd, one head per (head, row-tile) grid step.
#   out = x * cos_full + pair_swap(x) * sin_signed
# where cos_full[2i] = cos_full[2i+1] = cos_i,
#       sin_signed[2i] = -sin_i, sin_signed[2i+1] = +sin_i.
# The pair swap (j -> j^1) is done with a small permutation matmul on the MXU
# (unambiguous, no strided lane gathers / relayouts).
# ----------------------------------------------------------------------------
def _rope_kernel(x_ref, cos_ref, sin_ref, o_ref):
    x = x_ref[...]                      # (rows, Hd) f32
    hd = x.shape[-1]
    r = lax.broadcasted_iota(jnp.int32, (hd, hd), 0)
    c = lax.broadcasted_iota(jnp.int32, (hd, hd), 1)
    perm = (c == (r ^ 1)).astype(jnp.float32)           # P[a, a^1] = 1
    swapped = jnp.dot(x, perm, preferred_element_type=jnp.float32)  # x[:, j^1]
    o_ref[...] = (x * cos_ref[...] + swapped * sin_ref[...]).astype(o_ref.dtype)


def pallas_rope(x2d, cos_full, sin_signed, head_dim, *, row_cap=256):
    M, N = x2d.shape
    H = N // head_dim
    assert H * head_dim == N
    bm = _pick_tile(M, row_cap, 8)
    assert M % bm == 0
    x_spec = pl.BlockSpec((bm, head_dim), lambda h, i: (i, h))
    cs_spec = pl.BlockSpec((bm, head_dim), lambda h, i: (i, 0))
    return pl.pallas_call(
        _rope_kernel,
        out_shape=jax.ShapeDtypeStruct((M, N), x2d.dtype),
        grid=(H, M // bm),
        in_specs=[x_spec, cs_spec, cs_spec],
        out_specs=x_spec,
        compiler_params=pltpu.CompilerParams(
            dimension_semantics=("parallel", "parallel")
        ),
    )(x2d, cos_full, sin_signed)


# ----------------------------------------------------------------------------
# KV-cache update: aliased scatter that writes only the new S rows
# (the rest of the cache is preserved through input_output_aliases).
# ----------------------------------------------------------------------------
def _cache_update_kernel(new_ref, cache_hbm_ref, out_ref):
    del cache_hbm_ref  # only present to establish the alias; never copied.
    out_ref[...] = new_ref[...]


def pallas_cache_update(cache, new_bsn, start_pos):
    B, S, N = new_bsn.shape
    max_b, max_s, N2 = cache.shape
    assert N == N2 and start_pos + S <= max_s and B <= max_b
    if S % 8 != 0 or start_pos % 8 != 0:
        # TODO(synk): unaligned start_pos / seq_len — fall back to a full copy.
        return lax.dynamic_update_slice(cache, new_bsn, (0, start_pos, 0))
    sb = 8
    return pl.pallas_call(
        _cache_update_kernel,
        out_shape=jax.ShapeDtypeStruct(cache.shape, cache.dtype),
        grid=(S // sb,),
        in_specs=[
            pl.BlockSpec((B, sb, N), lambda i: (0, i, 0)),
            pl.BlockSpec(memory_space=pl.ANY),   # raw HBM ref, no DMA
        ],
        out_specs=pl.BlockSpec((B, sb, N), lambda i: (0, start_pos // sb + i, 0)),
        input_output_aliases={1: 0},
    )(new_bsn, cache)


# ----------------------------------------------------------------------------
# Flash-style attention over the (un-repeated) KV cache.
#   q:      (B, S, Hq*Hd)   cache_k/v: (maxB, maxS, Hkv*Hd)
#   grid:   (B, Hq, S/bq, T/bkv), last axis "arbitrary" (online softmax)
#   GQA:    kv index_map uses (h % n_kv_heads), matching the spec's repeat_kv
#           (unsqueeze at dim 2 => query head m uses kv head m % n_kv_heads).
# ----------------------------------------------------------------------------
def _flash_attn_kernel(q_ref, k_ref, v_ref, o_ref, m_ref, l_ref, acc_ref, *, scale):
    ki = pl.program_id(3)

    @pl.when(ki == 0)
    def _():
        m_ref[...] = jnp.full(m_ref.shape, -jnp.inf, m_ref.dtype)
        l_ref[...] = jnp.zeros(l_ref.shape, l_ref.dtype)
        acc_ref[...] = jnp.zeros(acc_ref.shape, acc_ref.dtype)

    q = q_ref[...] * scale                           # fold 1/sqrt(Hd) into q
    k = k_ref[...]
    v = v_ref[...]

    # Contract the last dims directly (no k.T relayout before the MXU).
    s = lax.dot_general(
        q, k, (((1,), (1,)), ((), ())), preferred_element_type=jnp.float32
    )                                                 # (bq, bkv)

    m_prev = m_ref[...]
    m_new = jnp.maximum(m_prev, jnp.max(s, axis=-1, keepdims=True))
    alpha = jnp.exp(m_prev - m_new)
    p = jnp.exp(s - m_new)
    l_ref[...] = alpha * l_ref[...] + jnp.sum(p, axis=-1, keepdims=True)
    acc_ref[...] = alpha * acc_ref[...] + jnp.dot(
        p, v, preferred_element_type=jnp.float32
    )
    m_ref[...] = m_new

    @pl.when(ki == pl.num_programs(3) - 1)
    def _():
        inv_l = pl.reciprocal(l_ref[...], approx=True)
        o_ref[...] = (acc_ref[...] * inv_l).astype(o_ref.dtype)


def pallas_flash_attention(q3, cache_k, cache_v, *, n_q_heads, n_kv_heads,
                           head_dim, kv_len, scale, block_q=256, block_kv=256):
    B, S, QN = q3.shape
    max_b, max_s, KN = cache_k.shape
    assert QN == n_q_heads * head_dim and KN == n_kv_heads * head_dim
    assert kv_len <= max_s and B <= max_b
    bq = _pick_tile(S, block_q, 8)
    bkv = _pick_tile(kv_len, block_kv, 8)
    assert S % bq == 0 and kv_len % bkv == 0

    grid = (B, n_q_heads, S // bq, kv_len // bkv)
    q_spec = pl.BlockSpec((None, bq, head_dim), lambda b, h, qi, ki: (b, qi, h))
    kv_spec = pl.BlockSpec(
        (None, bkv, head_dim), lambda b, h, qi, ki: (b, ki, h % n_kv_heads)
    )
    o_spec = pl.BlockSpec((None, bq, head_dim), lambda b, h, qi, ki: (b, qi, h))

    return pl.pallas_call(
        functools.partial(_flash_attn_kernel, scale=scale),
        out_shape=jax.ShapeDtypeStruct((B, S, QN), jnp.float32),
        grid=grid,
        in_specs=[q_spec, kv_spec, kv_spec],
        out_specs=o_spec,
        scratch_shapes=[
            pltpu.VMEM((bq, 1), jnp.float32),          # running max m
            pltpu.VMEM((bq, 1), jnp.float32),          # running sum l
            pltpu.VMEM((bq, head_dim), jnp.float32),   # output accumulator
        ],
        compiler_params=pltpu.CompilerParams(
            dimension_semantics=("parallel", "parallel", "parallel", "arbitrary"),
            vmem_limit_bytes=32 * 1024 * 1024,
        ),
    )(q3, cache_k, cache_v)


# ----------------------------------------------------------------------------
# Module wrapper
# ----------------------------------------------------------------------------
class SelfAttentionPallas:
    def __init__(self, dim, n_heads, n_kv_heads, max_batch_size, max_seq_len, key,
                 attn_block_q=256, attn_block_kv=256):
        self.dim = dim
        self.n_heads_q = n_heads
        self.n_kv_heads = n_kv_heads
        self.n_rep = n_heads // n_kv_heads
        self.head_dim = dim // n_heads
        self.attn_block_q = attn_block_q
        self.attn_block_kv = attn_block_kv

        hd = self.head_dim
        k1, k2, k3, k4 = jax.random.split(key, 4)
        wq = 0.05 * jax.random.normal(k1, (n_heads * hd, dim), jnp.float32)
        wk = 0.05 * jax.random.normal(k2, (n_kv_heads * hd, dim), jnp.float32)
        wv = 0.05 * jax.random.normal(k3, (n_kv_heads * hd, dim), jnp.float32)
        wo = 0.05 * jax.random.normal(k4, (dim, n_heads * hd), jnp.float32)
        # Fused QKV weight, transposed to (K, N) and stored bf16 for the MXU.
        self.w_qkv_t = jnp.concatenate([wq.T, wk.T, wv.T], axis=1).astype(jnp.bfloat16)
        self.wo_t = wo.T.astype(jnp.bfloat16)
        # KV caches in flattened (maxB, maxS, n_kv*Hd) layout, zero-init (f32).
        self.cache_k = jnp.zeros(
            (max_batch_size, max_seq_len, n_kv_heads * hd), jnp.float32
        )
        self.cache_v = jnp.zeros_like(self.cache_k)

    def __call__(self, x, start_pos, cos, sin):
        B, S, D = x.shape
        Hq, Hkv, Hd = self.n_heads_q, self.n_kv_heads, self.head_dim
        M = B * S
        x2d = x.reshape(M, D)

        # --- fused QKV projection (one tiled matmul) ----------------------
        qkv = pallas_linear(x2d, self.w_qkv_t)          # (M, (Hq+2*Hkv)*Hd) f32
        n_rot = (Hq + Hkv) * Hd                          # q|k columns get RoPE

        # --- RoPE on the q|k columns, lane-dense over Hd -------------------
        # cos_full / sin_signed are tiny (M, Hd) tables, head-independent.
        cos_full = jnp.repeat(cos, 2, axis=-1)                           # (S, Hd)
        sin_signed = jnp.stack([-sin, sin], axis=-1).reshape(S, Hd)      # (S, Hd)
        cos_b = jnp.broadcast_to(cos_full[None], (B, S, Hd)).reshape(M, Hd)
        sin_b = jnp.broadcast_to(sin_signed[None], (B, S, Hd)).reshape(M, Hd)
        # TODO(synk): further fusion — fold RoPE into the QKV kernel epilogue.
        qk_rot = pallas_rope(qkv[:, :n_rot], cos_b, sin_b, Hd)

        q3 = qk_rot[:, : Hq * Hd].reshape(B, S, Hq * Hd)
        xk3 = qk_rot[:, Hq * Hd:].reshape(B, S, Hkv * Hd)
        xv3 = qkv[:, n_rot:].reshape(B, S, Hkv * Hd)

        # --- KV cache update (aliased scatter, only new rows written) ------
        self.cache_k = pallas_cache_update(self.cache_k, xk3, start_pos)
        self.cache_v = pallas_cache_update(self.cache_v, xv3, start_pos)

        # --- flash attention over cache rows [0, start_pos + S) ------------
        # No causal mask (matches the reference PyTorch module).
        out3 = pallas_flash_attention(
            q3, self.cache_k, self.cache_v,
            n_q_heads=Hq, n_kv_heads=Hkv, head_dim=Hd,
            kv_len=start_pos + S, scale=1.0 / math.sqrt(Hd),
            block_q=self.attn_block_q, block_kv=self.attn_block_kv,
        )                                                # (B, S, Hq*Hd)

        # --- output projection ---------------------------------------------
        out2d = out3.reshape(M, Hq * Hd)
        return pallas_linear(out2d, self.wo_t).reshape(B, S, D)


# ----------------------------------------------------------------------------
# Pure-JAX reference (mirrors the PyTorch forward, incl. its repeat_kv which
# maps query head m -> kv head (m % n_kv_heads)) for validation.
# ----------------------------------------------------------------------------
def reference_forward(module, x, start_pos, cos, sin):
    B, S, D = x.shape
    Hq, Hkv, Hd = module.n_heads_q, module.n_kv_heads, module.head_dim
    n_rep = module.n_rep
    w = module.w_qkv_t.astype(jnp.float32)
    wq_t = w[:, : Hq * Hd]
    wk_t = w[:, Hq * Hd:(Hq + Hkv) * Hd]
    wv_t = w[:, (Hq + Hkv) * Hd:]
    wo_t = module.wo_t.astype(jnp.float32)

    x2 = x.reshape(B * S, D)
    xq = (x2 @ wq_t).reshape(B, S, Hq, Hd)
    xk = (x2 @ wk_t).reshape(B, S, Hkv, Hd)
    xv = (x2 @ wv_t).reshape(B, S, Hkv, Hd)

    def rope(t):
        tr = t.reshape(*t.shape[:-1], Hd // 2, 2)
        xe, xo = tr[..., 0], tr[..., 1]
        c = cos[None, :, None, :]
        s = sin[None, :, None, :]
        oe = xe * c - xo * s
        oo = xe * s + xo * c
        return jnp.stack([oe, oo], axis=-1).reshape(t.shape)

    xq, xk = rope(xq), rope(xk)
    T = start_pos + S
    keys = jnp.zeros((B, T, Hkv, Hd), jnp.float32).at[:, start_pos:].set(xk)
    values = jnp.zeros((B, T, Hkv, Hd), jnp.float32).at[:, start_pos:].set(xv)
    # torch-spec repeat_kv: unsqueeze(2) + expand -> head m uses kv head m % Hkv
    keys = jnp.broadcast_to(keys[:, :, None], (B, T, n_rep, Hkv, Hd)).reshape(B, T, Hq, Hd)
    values = jnp.broadcast_to(values[:, :, None], (B, T, n_rep, Hkv, Hd)).reshape(B, T, Hq, Hd)

    q = jnp.transpose(xq, (0, 2, 1, 3))
    k = jnp.transpose(keys, (0, 2, 1, 3))
    v = jnp.transpose(values, (0, 2, 1, 3))
    scores = jnp.einsum("bhsd,bhtd->bhst", q, k) / math.sqrt(Hd)
    probs = jax.nn.softmax(scores, axis=-1)
    out = jnp.einsum("bhst,bhtd->bhsd", probs, v)
    out = jnp.transpose(out, (0, 2, 1, 3)).reshape(B * S, Hq * Hd)
    return (out @ wo_t).reshape(B, S, D)


# ----------------------------------------------------------------------------
if __name__ == "__main__":
    # Small config with TPU-friendly head_dim=128: dim=512, 4 query heads,
    # 2 kv heads (GQA, n_rep=2).
    dim, n_heads, n_kv_heads = 512, 4, 2
    B, S, start_pos = 2, 16, 16
    max_batch_size, max_seq_len = 4, 64
    head_dim = dim // n_heads

    key = jax.random.PRNGKey(0)
    kw, kx = jax.random.split(key)
    # attn_block_kv=16 so the demo exercises the multi-tile online-softmax
    # path (use 256-512 at real context lengths).
    module = SelfAttentionPallas(
        dim, n_heads, n_kv_heads, max_batch_size, max_seq_len, kw,
        attn_block_kv=16,
    )

    x = jax.random.normal(kx, (B, S, dim), dtype=jnp.float32)

    # Rotary frequencies for positions [start_pos, start_pos + S): (S, head_dim//2)
    inv_freq = 1.0 / (
        10000.0 ** (jnp.arange(0, head_dim, 2, dtype=jnp.float32) / head_dim)
    )
    pos = jnp.arange(start_pos, start_pos + S, dtype=jnp.float32)
    angles = jnp.outer(pos, inv_freq)
    cos, sin = jnp.cos(angles), jnp.sin(angles)

    out = module(x, start_pos, cos, sin)
    out = jax.block_until_ready(out)

    ref = reference_forward(module, x, start_pos, cos, sin)
    np.testing.assert_allclose(np.asarray(out), np.asarray(ref), rtol=2e-2, atol=2e-2)
    assert out.shape == (B, S, dim)

    print("KERNEL_OK")
</pallas_src>

<mosaic_0001>
module attributes {stable_mosaic.version = 11 : i64} {
  func.func @_linear_kernel(%arg0: i32, %arg1: i32, %arg2: i32, %arg3: memref<32x512xf32, #tpu.memory_space<vmem>>, %arg4: memref<512x256xbf16, #tpu.memory_space<vmem>>, %arg5: memref<32x256xf32, #tpu.memory_space<vmem>>, %arg6: memref<32x256xf32, #tpu.memory_space<vmem>>) attributes {dimension_semantics = [#tpu.dimension_semantics<parallel>, #tpu.dimension_semantics<parallel>, #tpu.dimension_semantics<arbitrary>], iteration_bounds = array<i64: 1, 4, 1>, scalar_prefetch = 0 : i64, scratch_operands = 1 : i64, tpu.core_type = #tpu.core_type<tc>, window_params = [{transform_indices = @transform_0, window_bounds = array<i64: 32, 512>}, {transform_indices = @transform_1, window_bounds = array<i64: 512, 256>}, {transform_indices = @transform_2, window_bounds = array<i64: 32, 256>}]} {
    %c0_i32 = arith.constant 0 : i32
    %0 = arith.cmpi eq, %arg2, %c0_i32 : i32
    %1 = arith.extui %0 : i1 to i32
    %c0_i32_0 = arith.constant 0 : i32
    %2 = arith.cmpi ne, %1, %c0_i32_0 : i32
    scf.if %2 {
      %cst_10 = arith.constant 0.000000e+00 : f32
      %13 = vector.broadcast %cst_10 : f32 to vector<32x256xf32>
      %c0_11 = arith.constant 0 : index
      %c0_12 = arith.constant 0 : index
      %14 = vector.load %arg6[%c0_11, %c0_12] : memref<32x256xf32, #tpu.memory_space<vmem>>, vector<32x256xf32>
      tpu.vector_store %arg6[%c0_11, %c0_12], %13 {strides = array<i32>} : memref<32x256xf32, #tpu.memory_space<vmem>>, vector<32x256xf32>,
    } else {
    }
    %c0 = arith.constant 0 : index
    %c0_1 = arith.constant 0 : index
    %3 = vector.load %arg6[%c0, %c0_1] : memref<32x256xf32, #tpu.memory_space<vmem>>, vector<32x256xf32>
    %c0_2 = arith.constant 0 : index
    %c0_3 = arith.constant 0 : index
    %4 = vector.load %arg3[%c0_2, %c0_3] : memref<32x512xf32, #tpu.memory_space<vmem>>, vector<32x512xf32>
    %5 = arith.truncf %4 : vector<32x512xf32> to vector<32x512xbf16>
    %c0_4 = arith.constant 0 : index
    %c0_5 = arith.constant 0 : index
    %6 = vector.load %arg4[%c0_4, %c0_5] : memref<512x256xbf16, #tpu.memory_space<vmem>>, vector<512x256xbf16>
    %cst = arith.constant dense<0.000000e+00> : vector<32x256xf32>
    %7 = tpu.matmul %5, %6, %cst {dimension_numbers = #tpu.dot_dimension_numbers<[1], [0], [0], [1], [0, 0, 1, 1], [], []>} : vector<32x512xbf16>, vector<512x256xbf16>, vector<32x256xf32> -> vector<32x256xf32>
    %8 = arith.addf %3, %7 : vector<32x256xf32>
    %c0_6 = arith.constant 0 : index
    %c0_7 = arith.constant 0 : index
    %9 = vector.load %arg6[%c0_6, %c0_7] : memref<32x256xf32, #tpu.memory_space<vmem>>, vector<32x256xf32>
    tpu.vector_store %arg6[%c0_6, %c0_7], %8 {strides = array<i32>} : memref<32x256xf32, #tpu.memory_space<vmem>>, vector<32x256xf32>,
    %c0_i32_8 = arith.constant 0 : i32
    %10 = arith.cmpi eq, %arg2, %c0_i32_8 : i32
    %11 = arith.extui %10 : i1 to i32
    %c0_i32_9 = arith.constant 0 : i32
    %12 = arith.cmpi ne, %11, %c0_i32_9 : i32
    scf.if %12 {
      %c0_10 = arith.constant 0 : index
      %c0_11 = arith.constant 0 : index
      %13 = vector.load %arg6[%c0_10, %c0_11] : memref<32x256xf32, #tpu.memory_space<vmem>>, vector<32x256xf32>
      %c0_12 = arith.constant 0 : index
      %c0_13 = arith.constant 0 : index
      %14 = vector.load %arg5[%c0_12, %c0_13] : memref<32x256xf32, #tpu.memory_space<vmem>>, vector<32x256xf32>
      tpu.vector_store %arg5[%c0_12, %c0_13], %13 {strides = array<i32>} : memref<32x256xf32, #tpu.memory_space<vmem>>, vector<32x256xf32>,
    } else {
    }
    return
  }
  func.func @transform_0(%arg0: i32, %arg1: i32, %arg2: i32) -> (i32, i32) {
    %c0_i32 = arith.constant 0 : i32
    return %arg0, %arg2 : i32, i32
  }
  func.func @transform_1(%arg0: i32, %arg1: i32, %arg2: i32) -> (i32, i32) {
    %c0_i32 = arith.constant 0 : i32
    return %arg2, %arg1 : i32, i32
  }
  func.func @transform_2(%arg0: i32, %arg1: i32, %arg2: i32) -> (i32, i32) {
    %c0_i32 = arith.constant 0 : i32
    return %arg0, %arg1 : i32, i32
  }
}

</mosaic_0001>

<llo_original>
// kernel: tpu_custom_call.1
$region0: #{tpu_custom_call.1}
  #allocation0 [shape = 'u32[]', space=smem, size = 0x4, offset = 0x4, fixed_abs, tag = 'smem constant byte address 0x4 - core index']
  #allocation1 [shape = 'u32[72,128]{1,0:T(1,128)}', space=vmem, size = 0x9000, scoped, tag = 'internal scratch']
  #allocation2 [shape = 'f32[32,256]{1,0:T(8,128)}', space=vmem, size = 0x8000, scoped, tag = 'scratch operand']
  %s0 = inlined_call_operand.hbm [shape: f32[32,512], index: 0, kind: input, shape index: {}]
  %s1 = inlined_call_operand.hbm [shape: bf16[512,1024], index: 1, kind: input, shape index: {}]
  %s2 = inlined_call_operand.hbm [shape: f32[32,1024], index: 2, kind: output, shape index: {}]
  %s3 = sld [smem:[#allocation0]]
  $region57: #{tpu_custom_call.1} parent=0
    _
  %s5 = ssub.s32 1, %s3
  %s6 = scalar_select 0, %s5, %s3
  $region1: #{tpu_custom_call.1} parent=0
    #allocation3 [shape = 'u8[65536]{0}', space=vmem, size = 0x10000, scoped, tag = 'input window, operand 0, single buffered']
    #allocation4 [shape = 's32[2]{0}', space=sflag, size = 0x8, scoped, tag = 'scoped memory for tpu_custom_call.1']
    #allocation5 [shape = 's32[2]{0}', space=sflag, size = 0x8, scoped, tag = 'scoped memory for tpu_custom_call.1']
    #allocation6 [shape = 'u8[524288]{0}', space=vmem, size = 0x80000, scoped, tag = 'input window, operand 1']
    #allocation7 [shape = 's32[2]{0}', space=sflag, size = 0x8, scoped, tag = 'scoped memory for tpu_custom_call.1']
    #allocation8 [shape = 'u8[65536]{0}', space=vmem, size = 0x10000, scoped, tag = 'output window, operand 0']
    %7 = vsyncpa [#allocation4], 0
    %8 = vsyncpa [#allocation7], 0
    %s9 = scalar_lea.sflag [#allocation7], 1
    %10 = vsyncpa %s9, 0
    %11 = vsyncpa [#allocation5], 0
    %s12 = scalar_lea.sflag [#allocation5], 1
    %13 = vsyncpa %s12, 0
    loop: start=0, step=1, limit=6
    $region2: #{tpu_custom_call.1} parent=1 // loop_pre_header
      _
    $region3: #{tpu_custom_call.1} parent=1 // loop_header
      %s15 = sphi 0, %s19
      %p16 = scmp.ge.s32.totalorder %s15, 6
      %s22 = sphi 0, %s41
      %s23 = sphi 0, %s37
      %s24 = sphi 0, %s33
      %s25 = sphi 0, %s22
      %s26 = sphi 0, %s23
      %s27 = sphi 0, %s24
      %s28 = sphi 0, %s25
      %s29 = sphi 0, %s26
      %s30 = sphi 0, %s27
      %s46 = sphi 0, %s48
      %s49 = sphi 0, %s46
      %s50 = sphi 0, %s49
      %s66 = sphi 0, %s50
      %s74 = sphi 0, %s76
      %s77 = sphi 0, %s74
      %s78 = sphi 0, %s77
      %s94 = sphi 0, %s78
      %s102 = sphi 0, %s104
      %s105 = sphi 0, %s102
      %s106 = sphi 0, %s105
      %s122 = sphi 0, %s106
    $region4: #{tpu_custom_call.1} parent=1 // loop_header_branch
      %18 = sbr.rel (%p16) target = $region8
    $region5: #{tpu_custom_call.1} parent=1 // loop_body
      %s20 = ssub.s32 %s15, 1
      %s21 = ssub.s32 %s15, 2
      %s31 = sadd.s32 1, %s24
      %p32 = scmp.ge.s32.totalorder %s31, 1
      %s33 = scalar_select %p32, 0, %s31
      %s34 = sadd.s32 1, %s23
      %s35 = scalar_select %p32, %s34, %s23
      %p36 = scmp.ge.s32.totalorder %s35, 4
      %s37 = scalar_select %p36, 0, %s35
      %s38 = sadd.s32 1, %s22
      %s39 = scalar_select %p36, %s38, %s22
      %p40 = scmp.ge.s32.totalorder %s39, 1
      %s41 = scalar_select %p40, 0, %s39
      %s42 = ssub.s32 %s22, %s41
      %s43 = ssub.s32 %s24, %s33
      %s44 = sor.u32 %s42, %s43
      %p45 = scmp.eq.s32.totalorder %s44, 0
      %s47 = sadd.s32 %s46, 1
      %s48 = scalar_select %p45, %s46, %s47
      %p51 = pneg %p45
      %p52 = scmp.eq.s32.totalorder %s15, 3
      %p53 = por %p51, %p52
      %p54 = scmp.ne.s32.totalorder %s46, %s49
      %p55 = scmp.eq.s32.totalorder %s15, 0
      %p56 = por %p54, %p55
      %p57 = scmp.ne.s32.totalorder %s46, %s49
      %p58 = scmp.eq.s32.totalorder %s20, 3
      %p59 = por %p57, %p58
      %p60 = scmp.ne.s32.totalorder %s49, %s50
      %p61 = scmp.eq.s32.totalorder %s20, 0
      %p62 = por %p60, %p61
      %p63 = scmp.ne.s32.totalorder %s49, %s50
      %p64 = scmp.eq.s32.totalorder %s21, 3
      %p65 = por %p63, %p64
      %p67 = scmp.ne.s32.totalorder %s50, %s66
      %p68 = scmp.eq.s32.totalorder %s21, 0
      %p69 = por %p67, %p68
      %s70 = ssub.s32 %s24, %s33
      %s71 = ssub.s32 %s23, %s37
      %s72 = sor.u32 %s70, %s71
      %p73 = scmp.eq.s32.totalorder %s72, 0
      %s75 = sadd.s32 %s74, 1
      %s76 = scalar_select %p73, %s74, %s75
      %p79 = pneg %p73
      %p80 = scmp.eq.s32.totalorder %s15, 3
      %p81 = por %p79, %p80
      %p82 = scmp.ne.s32.totalorder %s74, %s77
      %p83 = scmp.eq.s32.totalorder %s15, 0
      %p84 = por %p82, %p83
      %p85 = scmp.ne.s32.totalorder %s74, %s77
      %p86 = scmp.eq.s32.totalorder %s20, 3
      %p87 = por %p85, %p86
      %p88 = scmp.ne.s32.totalorder %s77, %s78
      %p89 = scmp.eq.s32.totalorder %s20, 0
      %p90 = por %p88, %p89
      %p91 = scmp.ne.s32.totalorder %s77, %s78
      %p92 = scmp.eq.s32.totalorder %s21, 3
      %p93 = por %p91, %p92
      %p95 = scmp.ne.s32.totalorder %s78, %s94
      %p96 = scmp.eq.s32.totalorder %s21, 0
      %p97 = por %p95, %p96
      %s98 = ssub.s32 %s22, %s41
      %s99 = ssub.s32 %s23, %s37
      %s100 = sor.u32 %s98, %s99
      %p101 = scmp.eq.s32.totalorder %s100, 0
      %s103 = sadd.s32 %s102, 1
      %s104 = scalar_select %p101, %s102, %s103
      %p107 = pneg %p101
      %p108 = scmp.eq.s32.totalorder %s15, 3
      %p109 = por %p107, %p108
      %p110 = scmp.ne.s32.totalorder %s102, %s105
      %p111 = scmp.eq.s32.totalorder %s15, 0
      %p112 = por %p110, %p111
      %p113 = scmp.ne.s32.totalorder %s102, %s105
      %p114 = scmp.eq.s32.totalorder %s20, 3
      %p115 = por %p113, %p114
      %p116 = scmp.ne.s32.totalorder %s105, %s106
      %p117 = scmp.eq.s32.totalorder %s20, 0
      %p118 = por %p116, %p117
      %p119 = scmp.ne.s32.totalorder %s105, %s106
      %p120 = scmp.eq.s32.totalorder %s21, 3
      %p121 = por %p119, %p120
      %p123 = scmp.ne.s32.totalorder %s106, %s122
      %p124 = scmp.eq.s32.totalorder %s21, 0
      %p125 = por %p123, %p124
      %p126 = scmp.le.s32.totalorder 1, %s15
      %p127 = scmp.lt.s32.totalorder %s15, 5
      %p128 = pnand %p126, %p127
      %p129 = pneg %p128
      // Predicated region
      $region9: #{tpu_custom_call.1} parent=5 // pred_check
        _
      $region10: #{tpu_custom_call.1} parent=5 // pred_check_branch
        %131 = sbr.rel (%p128) target = $region12
      $region11: #{tpu_custom_call.1} parent=5 // pred_region
        %s132 = ssub.s32 %s15, 1
        // Predicated region
        $region13: #{tpu_custom_call.1} parent=11 // pred_check
          %p133 = pneg %p62
        $region14: #{tpu_custom_call.1} parent=11 // pred_check_branch
          %135 = sbr.rel (%p133) target = $region16
        $region15: #{tpu_custom_call.1} parent=11 // pred_region
          %s136 = smul.u32 4, %s25
          %s137 = smul.u32 4, %s27
          %139 = vsyncadd [#allocation4], 0
          %s140 = smul.addr %s136, 4
          %s141 = sadd.s32 %s137, %s140
          %s142 = smul.addr %s141, 8
          %s143 = scalar_lea.hbm %s0, %s142
          %s144 = sshll.u32 %s143, 4
          %s145 = int_to_ptr.hbm [resolvable:$true] %s144
          %s146 = sshll.u32 [#allocation3], 4
          %s147 = int_to_ptr.vmem [resolvable:$true] %s146
          %152 = dma.hbm_to_vmem [thread:$0]  %s145, 2048, %s147, [#allocation4], 512, 512, 32
        $region16: #{tpu_custom_call.1} parent=11 // pred_fallthru
          _
      $region12: #{tpu_custom_call.1} parent=5 // pred_fallthru
        _
      %p153 = scmp.lt.s32.totalorder %s15, 4
      // Predicated region
      $region17: #{tpu_custom_call.1} parent=5 // pred_check
        %p154 = pneg %p153
      $region18: #{tpu_custom_call.1} parent=5 // pred_check_branch
        %156 = sbr.rel (%p154) target = $region20
      $region19: #{tpu_custom_call.1} parent=5 // pred_region
        // Predicated region
        $region21: #{tpu_custom_call.1} parent=19 // pred_check
          %p157 = pneg %p84
        $region22: #{tpu_custom_call.1} parent=19 // pred_check_branch
          %159 = sbr.rel (%p157) target = $region24
        $region23: #{tpu_custom_call.1} parent=19 // pred_region
          %s160 = sand.u32 %s74, 1
          %s161 = scalar_lea.sflag [#allocation7], %s160
          %s162 = sand.u32 %s74, 1
          %s163 = smul.addr %s162, 512
          %s164 = scalar_lea.vmem [#allocation6], %s163
          %s165 = smul.u32 64, %s24
          %s166 = smul.u32 2, %s23
          %168 = vsyncadd %s161, 0
          %s169 = smul.addr %s165, 8
          %s170 = sadd.s32 %s166, %s169
          %s171 = smul.addr %s170, 4
          %s172 = scalar_lea.hbm %s1, %s171
          %s173 = sshll.u32 %s172, 4
          %s174 = int_to_ptr.hbm [resolvable:$true] %s173
          %s175 = sshll.u32 %s164, 4
          %s176 = int_to_ptr.vmem [resolvable:$true] %s175
          %181 = dma.hbm_to_vmem [thread:$0]  %s174, 8192, %s176, %s161, 512, 128, 8
        $region24: #{tpu_custom_call.1} parent=19 // pred_fallthru
          _
      $region20: #{tpu_custom_call.1} parent=5 // pred_fallthru
        _
      %p182 = scmp.le.s32.totalorder 1, %s15
      %p183 = scmp.lt.s32.totalorder %s15, 5
      %p184 = pnand %p182, %p183
      %p185 = pneg %p184
      // Predicated region
      $region25: #{tpu_custom_call.1} parent=5 // pred_check
        _
      $region26: #{tpu_custom_call.1} parent=5 // pred_check_branch
        %187 = sbr.rel (%p184) target = $region28
      $region27: #{tpu_custom_call.1} parent=5 // pred_region
        %s188 = ssub.s32 %s15, 1
        // Predicated region
        $region29: #{tpu_custom_call.1} parent=27 // pred_check
          %p189 = pneg %p62
        $region30: #{tpu_custom_call.1} parent=27 // pred_check_branch
          %191 = sbr.rel (%p189) target = $region32
        $region31: #{tpu_custom_call.1} parent=27 // pred_region
          %193 = dma.done [#allocation4], 2048
        $region32: #{tpu_custom_call.1} parent=27 // pred_fallthru
          _
        %s194 = sand.u32 %s77, 1
        %s195 = scalar_lea.sflag [#allocation7], %s194
        %s196 = sand.u32 %s77, 1
        %s197 = smul.addr %s196, 512
        %s198 = scalar_lea.vmem [#allocation6], %s197
        // Predicated region
        $region33: #{tpu_custom_call.1} parent=27 // pred_check
          %p199 = pneg %p90
        $region34: #{tpu_custom_call.1} parent=27 // pred_check_branch
          %201 = sbr.rel (%p199) target = $region36
        $region35: #{tpu_custom_call.1} parent=27 // pred_region
          %203 = dma.done %s195, 8192
        $region36: #{tpu_custom_call.1} parent=27 // pred_fallthru
          _
        %p204 = pneg %p62
        %p205 = pneg %p59
        %s206 = sand.u32 %s77, 1
        %s207 = scalar_lea.sflag [#allocation7], %s206
        %s208 = sand.u32 %s77, 1
        %s209 = smul.addr %s208, 512
        %s210 = scalar_lea.vmem [#allocation6], %s209
        %p211 = pneg %p90
        %p212 = pneg %p87
        %p213 = pneg %p118
        %p214 = pneg %p115
        %s215 = sand.u32 %s105, 1
        %s216 = scalar_lea.sflag [#allocation5], %s215
        %s217 = sand.u32 %s105, 1
        %s218 = smul.addr %s217, 64
        %s219 = scalar_lea.vmem [#allocation8], %s218
        %s220 = smul.u32 4, %s25
        %s221 = smul.u32 4, %s27
        %s222 = smul.u32 64, %s27
        %s223 = smul.u32 2, %s26
        %s224 = smul.u32 4, %s25
        %s225 = smul.u32 2, %s26
        %p226 = scmp.eq.s32.totalorder %s27, 0
        // Predicated region
        $region37: #{tpu_custom_call.1} parent=27 // pred_check
          %p227 = pneg %p226
        $region38: #{tpu_custom_call.1} parent=27 // pred_check_branch
          %229 = sbr.rel (%p227) target = $region40
        $region39: #{tpu_custom_call.1} parent=27 // pred_region
          %230 = vst [vmem:[#allocation2] sm:$0xff] 0.0
          %231 = vst [vmem:[#allocation2 + $0x8] sm:$0xff] 0.0
          %232 = vst [vmem:[#allocation2 + $0x10] sm:$0xff] 0.0
          %233 = vst [vmem:[#allocation2 + $0x18] sm:$0xff] 0.0
          %234 = vst [vmem:[#allocation2 + $0x20] sm:$0xff] 0.0
          %235 = vst [vmem:[#allocation2 + $0x28] sm:$0xff] 0.0
          %236 = vst [vmem:[#allocation2 + $0x30] sm:$0xff] 0.0
          %237 = vst [vmem:[#allocation2 + $0x38] sm:$0xff] 0.0
        $region40: #{tpu_custom_call.1} parent=27 // pred_fallthru
          _
        %v238 = vld [vmem:[#allocation2] sm:$0xff]
        %v239 = vld [vmem:[#allocation2 + $0x8] sm:$0xff]
        %v240 = vld [vmem:[#allocation2 + $0x10] sm:$0xff]
        %v241 = vld [vmem:[#allocation2 + $0x18] sm:$0xff]
        %v242 = vld [vmem:[#allocation2 + $0x20] sm:$0xff]
        %v243 = vld [vmem:[#allocation2 + $0x28] sm:$0xff]
        %v244 = vld [vmem:[#allocation2 + $0x30] sm:$0xff]
        %v245 = vld [vmem:[#allocation2 + $0x38] sm:$0xff]
        %v246 = vld [vmem:[#allocation3] sm:$0xff]
        %v247 = vld [vmem:[#allocation3 + $0x8] sm:$0xff]
        %v248 = vld [vmem:[#allocation3 + $0x10] sm:$0xff]
        %v249 = vld [vmem:[#allocation3 + $0x18] sm:$0xff]
        %v250 = vld [vmem:[#allocation3 + $0x20] sm:$0xff]
        %v251 = vld [vmem:[#allocation3 + $0x28] sm:$0xff]
        %v252 = vld [vmem:[#allocation3 + $0x30] sm:$0xff]
        %v253 = vld [vmem:[#allocation3 + $0x38] sm:$0xff]
        %v254 = vld [vmem:[#allocation3 + $0x40] sm:$0xff]
        %v255 = vld [vmem:[#allocation3 + $0x48] sm:$0xff]
        %v256 = vld [vmem:[#allocation3 + $0x50] sm:$0xff]
        %v257 = vld [vmem:[#allocation3 + $0x58] sm:$0xff]
        %v258 = vld [vmem:[#allocation3 + $0x60] sm:$0xff]
        %v259 = vld [vmem:[#allocation3 + $0x68] sm:$0xff]
        %v260 = vld [vmem:[#allocation3 + $0x70] sm:$0xff]
        %v261 = vld [vmem:[#allocation3 + $0x78] sm:$0xff]
        %v262 = vpack.c.bf16 %v250, %v246
        %v263 = vpack.c.bf16 %v251, %v247
        %v264 = vpack.c.bf16 %v252, %v248
        %v265 = vpack.c.bf16 %v253, %v249
        %v266 = vpack.c.bf16 %v258, %v254
        %v267 = vpack.c.bf16 %v259, %v255
        %v268 = vpack.c.bf16 %v260, %v256
        %v269 = vpack.c.bf16 %v261, %v257
        %v270 = vld [vmem:[%s198] sm:$0xff]
        %v271 = vld [vmem:[%s198 + $0x8] sm:$0xff]
        %v272 = vld [vmem:[%s198 + $0x10] sm:$0xff]
        %v273 = vld [vmem:[%s198 + $0x18] sm:$0xff]
        %v274 = vld [vmem:[%s198 + $0x20] sm:$0xff]
        %v275 = vld [vmem:[%s198 + $0x28] sm:$0xff]
        %v276 = vld [vmem:[%s198 + $0x30] sm:$0xff]
        %v277 = vld [vmem:[%s198 + $0x38] sm:$0xff]
        %v278 = vld [vmem:[%s198 + $0x40] sm:$0xff]
        %v279 = vld [vmem:[%s198 + $0x48] sm:$0xff]
        %v280 = vld [vmem:[%s198 + $0x50] sm:$0xff]
        %v281 = vld [vmem:[%s198 + $0x58] sm:$0xff]
        %v282 = vld [vmem:[%s198 + $0x60] sm:$0xff]
        %v283 = vld [vmem:[%s198 + $0x68] sm:$0xff]
        %v284 = vld [vmem:[%s198 + $0x70] sm:$0xff]
        %v285 = vld [vmem:[%s198 + $0x78] sm:$0xff]
        %v286 = vld [vmem:[%s198 + $0x80] sm:$0xff]
        %v287 = vld [vmem:[%s198 + $0x88] sm:$0xff]
        %v288 = vld [vmem:[%s198 + $0x90] sm:$0xff]
        %v289 = vld [vmem:[%s198 + $0x98] sm:$0xff]
        %v290 = vld [vmem:[%s198 + $0xa0] sm:$0xff]
        %v291 = vld [vmem:[%s198 + $0xa8] sm:$0xff]
        %v292 = vld [vmem:[%s198 + $0xb0] sm:$0xff]
        %v293 = vld [vmem:[%s198 + $0xb8] sm:$0xff]
        %v294 = vld [vmem:[%s198 + $0xc0] sm:$0xff]
        %v295 = vld [vmem:[%s198 + $0xc8] sm:$0xff]
        %v296 = vld [vmem:[%s198 + $0xd0] sm:$0xff]
        %v297 = vld [vmem:[%s198 + $0xd8] sm:$0xff]
        %v298 = vld [vmem:[%s198 + $0xe0] sm:$0xff]
        %v299 = vld [vmem:[%s198 + $0xe8] sm:$0xff]
        %v300 = vld [vmem:[%s198 + $0xf0] sm:$0xff]
        %v301 = vld [vmem:[%s198 + $0xf8] sm:$0xff]
        %v302 = vld [vmem:[%s198 + $0x100] sm:$0xff]
        %v303 = vld [vmem:[%s198 + $0x108] sm:$0xff]
        %v304 = vld [vmem:[%s198 + $0x110] sm:$0xff]
        %v305 = vld [vmem:[%s198 + $0x118] sm:$0xff]
        %v306 = vld [vmem:[%s198 + $0x120] sm:$0xff]
        %v307 = vld [vmem:[%s198 + $0x128] sm:$0xff]
        %v308 = vld [vmem:[%s198 + $0x130] sm:$0xff]
        %v309 = vld [vmem:[%s198 + $0x138] sm:$0xff]
        %v310 = vld [vmem:[%s198 + $0x140] sm:$0xff]
        %v311 = vld [vmem:[%s198 + $0x148] sm:$0xff]
        %v312 = vld [vmem:[%s198 + $0x150] sm:$0xff]
        %v313 = vld [vmem:[%s198 + $0x158] sm:$0xff]
        %v314 = vld [vmem:[%s198 + $0x160] sm:$0xff]
        %v315 = vld [vmem:[%s198 + $0x168] sm:$0xff]
        %v316 = vld [vmem:[%s198 + $0x170] sm:$0xff]
        %v317 = vld [vmem:[%s198 + $0x178] sm:$0xff]
        %v318 = vld [vmem:[%s198 + $0x180] sm:$0xff]
        %v319 = vld [vmem:[%s198 + $0x188] sm:$0xff]
        %v320 = vld [vmem:[%s198 + $0x190] sm:$0xff]
        %v321 = vld [vmem:[%s198 + $0x198] sm:$0xff]
        %v322 = vld [vmem:[%s198 + $0x1a0] sm:$0xff]
        %v323 = vld [vmem:[%s198 + $0x1a8] sm:$0xff]
        %v324 = vld [vmem:[%s198 + $0x1b0] sm:$0xff]
        %v325 = vld [vmem:[%s198 + $0x1b8] sm:$0xff]
        %v326 = vld [vmem:[%s198 + $0x1c0] sm:$0xff]
        %v327 = vld [vmem:[%s198 + $0x1c8] sm:$0xff]
        %v328 = vld [vmem:[%s198 + $0x1d0] sm:$0xff]
        %v329 = vld [vmem:[%s198 + $0x1d8] sm:$0xff]
        %v330 = vld [vmem:[%s198 + $0x1e0] sm:$0xff]
        %v331 = vld [vmem:[%s198 + $0x1e8] sm:$0xff]
        %v332 = vld [vmem:[%s198 + $0x1f0] sm:$0xff]
        %v333 = vld [vmem:[%s198 + $0x1f8] sm:$0xff]
        %v398 = vunpack.c.l.b16 %v270
        %v399 = vunpack.c.h.b16 %v270
        %v400 = vunpack.c.l.b16 %v271
        %v401 = vunpack.c.h.b16 %v271
        %v402 = vunpack.c.l.b16 %v272
        %v403 = vunpack.c.h.b16 %v272
        %v404 = vunpack.c.l.b16 %v273
        %v405 = vunpack.c.h.b16 %v273
        %v406 = vunpack.c.l.b16 %v274
        %v407 = vunpack.c.h.b16 %v274
        %v408 = vunpack.c.l.b16 %v275
        %v409 = vunpack.c.h.b16 %v275
        %v410 = vunpack.c.l.b16 %v276
        %v411 = vunpack.c.h.b16 %v276
        %v412 = vunpack.c.l.b16 %v277
        %v413 = vunpack.c.h.b16 %v277
        %v414 = vunpack.c.l.b16 %v278
        %v415 = vunpack.c.h.b16 %v278
        %v416 = vunpack.c.l.b16 %v279
        %v417 = vunpack.c.h.b16 %v279
        %v418 = vunpack.c.l.b16 %v280
        %v419 = vunpack.c.h.b16 %v280
        %v420 = vunpack.c.l.b16 %v281
        %v421 = vunpack.c.h.b16 %v281
        %v422 = vunpack.c.l.b16 %v282
        %v423 = vunpack.c.h.b16 %v282
        %v424 = vunpack.c.l.b16 %v283
        %v425 = vunpack.c.h.b16 %v283
        %v426 = vunpack.c.l.b16 %v284
        %v427 = vunpack.c.h.b16 %v284
        %v428 = vunpack.c.l.b16 %v285
        %v429 = vunpack.c.h.b16 %v285
        %v430 = vunpack.c.l.b16 %v286
        %v431 = vunpack.c.h.b16 %v286
        %v432 = vunpack.c.l.b16 %v287
        %v433 = vunpack.c.h.b16 %v287
        %v434 = vunpack.c.l.b16 %v288
        %v435 = vunpack.c.h.b16 %v288
        %v436 = vunpack.c.l.b16 %v289
        %v437 = vunpack.c.h.b16 %v289
        %v438 = vunpack.c.l.b16 %v290
        %v439 = vunpack.c.h.b16 %v290
        %v440 = vunpack.c.l.b16 %v291
        %v441 = vunpack.c.h.b16 %v291
        %v442 = vunpack.c.l.b16 %v292
        %v443 = vunpack.c.h.b16 %v292
        %v444 = vunpack.c.l.b16 %v293
        %v445 = vunpack.c.h.b16 %v293
        %v446 = vunpack.c.l.b16 %v294
        %v447 = vunpack.c.h.b16 %v294
        %v448 = vunpack.c.l.b16 %v295
        %v449 = vunpack.c.h.b16 %v295
        %v450 = vunpack.c.l.b16 %v296
        %v451 = vunpack.c.h.b16 %v296
        %v452 = vunpack.c.l.b16 %v297
        %v453 = vunpack.c.h.b16 %v297
        %v454 = vunpack.c.l.b16 %v298
        %v455 = vunpack.c.h.b16 %v298
        %v456 = vunpack.c.l.b16 %v299
        %v457 = vunpack.c.h.b16 %v299
        %v458 = vunpack.c.l.b16 %v300
        %v459 = vunpack.c.h.b16 %v300
        %v460 = vunpack.c.l.b16 %v301
        %v461 = vunpack.c.h.b16 %v301
        %v462 = vunpack.c.l.b16 %v302
        %v463 = vunpack.c.h.b16 %v302
        %v464 = vunpack.c.l.b16 %v303
        %v465 = vunpack.c.h.b16 %v303
        %v466 = vunpack.c.l.b16 %v304
        %v467 = vunpack.c.h.b16 %v304
        %v468 = vunpack.c.l.b16 %v305
        %v469 = vunpack.c.h.b16 %v305
        %v470 = vunpack.c.l.b16 %v306
        %v471 = vunpack.c.h.b16 %v306
        %v472 = vunpack.c.l.b16 %v307
        %v473 = vunpack.c.h.b16 %v307
        %v474 = vunpack.c.l.b16 %v308
        %v475 = vunpack.c.h.b16 %v308
        %v476 = vunpack.c.l.b16 %v309
        %v477 = vunpack.c.h.b16 %v309
        %v478 = vunpack.c.l.b16 %v310
        %v479 = vunpack.c.h.b16 %v310
        %v480 = vunpack.c.l.b16 %v311
        %v481 = vunpack.c.h.b16 %v311
        %v482 = vunpack.c.l.b16 %v312
        %v483 = vunpack.c.h.b16 %v312
        %v484 = vunpack.c.l.b16 %v313
        %v485 = vunpack.c.h.b16 %v313
        %v486 = vunpack.c.l.b16 %v314
        %v487 = vunpack.c.h.b16 %v314
        %v488 = vunpack.c.l.b16 %v315
        %v489 = vunpack.c.h.b16 %v315
        %v490 = vunpack.c.l.b16 %v316
        %v491 = vunpack.c.h.b16 %v316
        %v492 = vunpack.c.l.b16 %v317
        %v493 = vunpack.c.h.b16 %v317
        %v494 = vunpack.c.l.b16 %v318
        %v495 = vunpack.c.h.b16 %v318
        %v496 = vunpack.c.l.b16 %v319
        %v497 = vunpack.c.h.b16 %v319
        %v498 = vunpack.c.l.b16 %v320
        %v499 = vunpack.c.h.b16 %v320
        %v500 = vunpack.c.l.b16 %v321
        %v501 = vunpack.c.h.b16 %v321
        %v502 = vunpack.c.l.b16 %v322
        %v503 = vunpack.c.h.b16 %v322
        %v504 = vunpack.c.l.b16 %v323
        %v505 = vunpack.c.h.b16 %v323
        %v506 = vunpack.c.l.b16 %v324
        %v507 = vunpack.c.h.b16 %v324
        %v508 = vunpack.c.l.b16 %v325
        %v509 = vunpack.c.h.b16 %v325
        %v510 = vunpack.c.l.b16 %v326
        %v511 = vunpack.c.h.b16 %v326
        %v512 = vunpack.c.l.b16 %v327
        %v513 = vunpack.c.h.b16 %v327
        %v514 = vunpack.c.l.b16 %v328
        %v515 = vunpack.c.h.b16 %v328
        %v516 = vunpack.c.l.b16 %v329
        %v517 = vunpack.c.h.b16 %v329
        %v518 = vunpack.c.l.b16 %v330
        %v519 = vunpack.c.h.b16 %v330
        %v520 = vunpack.c.l.b16 %v331
        %v521 = vunpack.c.h.b16 %v331
        %v522 = vunpack.c.l.b16 %v332
        %v523 = vunpack.c.h.b16 %v332
        %v524 = vunpack.c.l.b16 %v333
        %v525 = vunpack.c.h.b16 %v333
        %v526 = vpack.c.b16 %v400, %v398
        %v527 = vpack.c.b16 %v401, %v399
        %v528 = vpack.c.b16 %v404, %v402
        %v529 = vpack.c.b16 %v405, %v403
        %v530 = vpack.c.b16 %v408, %v406
        %v531 = vpack.c.b16 %v409, %v407
        %v532 = vpack.c.b16 %v412, %v410
        %v533 = vpack.c.b16 %v413, %v411
        %v534 = vpack.c.b16 %v416, %v414
        %v535 = vpack.c.b16 %v417, %v415
        %v536 = vpack.c.b16 %v420, %v418
        %v537 = vpack.c.b16 %v421, %v419
        %v538 = vpack.c.b16 %v424, %v422
        %v539 = vpack.c.b16 %v425, %v423
        %v540 = vpack.c.b16 %v428, %v426
        %v541 = vpack.c.b16 %v429, %v427
        %v542 = vpack.c.b16 %v432, %v430
        %v543 = vpack.c.b16 %v433, %v431
        %v544 = vpack.c.b16 %v436, %v434
        %v545 = vpack.c.b16 %v437, %v435
        %v546 = vpack.c.b16 %v440, %v438
        %v547 = vpack.c.b16 %v441, %v439
        %v548 = vpack.c.b16 %v444, %v442
        %v549 = vpack.c.b16 %v445, %v443
        %v550 = vpack.c.b16 %v448, %v446
        %v551 = vpack.c.b16 %v449, %v447
        %v552 = vpack.c.b16 %v452, %v450
        %v553 = vpack.c.b16 %v453, %v451
        %v554 = vpack.c.b16 %v456, %v454
        %v555 = vpack.c.b16 %v457, %v455
        %v556 = vpack.c.b16 %v460, %v458
        %v557 = vpack.c.b16 %v461, %v459
        %v558 = vpack.c.b16 %v464, %v462
        %v559 = vpack.c.b16 %v465, %v463
        %v560 = vpack.c.b16 %v468, %v466
        %v561 = vpack.c.b16 %v469, %v467
        %v562 = vpack.c.b16 %v472, %v470
        %v563 = vpack.c.b16 %v473, %v471
        %v564 = vpack.c.b16 %v476, %v474
        %v565 = vpack.c.b16 %v477, %v475
        %v566 = vpack.c.b16 %v480, %v478
        %v567 = vpack.c.b16 %v481, %v479
        %v568 = vpack.c.b16 %v484, %v482
        %v569 = vpack.c.b16 %v485, %v483
        %v570 = vpack.c.b16 %v488, %v486
        %v571 = vpack.c.b16 %v489, %v487
        %v572 = vpack.c.b16 %v492, %v490
        %v573 = vpack.c.b16 %v493, %v491
        %v574 = vpack.c.b16 %v496, %v494
        %v575 = vpack.c.b16 %v497, %v495
        %v576 = vpack.c.b16 %v500, %v498
        %v577 = vpack.c.b16 %v501, %v499
        %v578 = vpack.c.b16 %v504, %v502
        %v579 = vpack.c.b16 %v505, %v503
        %v580 = vpack.c.b16 %v508, %v506
        %v581 = vpack.c.b16 %v509, %v507
        %v582 = vpack.c.b16 %v512, %v510
        %v583 = vpack.c.b16 %v513, %v511
        %v584 = vpack.c.b16 %v516, %v514
        %v585 = vpack.c.b16 %v517, %v515
        %v586 = vpack.c.b16 %v520, %v518
        %v587 = vpack.c.b16 %v521, %v519
        %v588 = vpack.c.b16 %v524, %v522
        %v589 = vpack.c.b16 %v525, %v523
        %654 = vmatpush.bf16.msra.mxu0 %v540
        %655 = vmatpush.bf16.msra.mxu0 %v538
        %656 = vmatpush.bf16.msra.mxu0 %v536
        %657 = vmatpush.bf16.msra.mxu0 %v534
        %658 = vmatpush.bf16.msra.mxu0 %v532
        %659 = vmatpush.bf16.msra.mxu0 %v530
        %660 = vmatpush.bf16.msra.mxu0 %v528
        %661 = vmatpush.bf16.msra.mxu0 %v526
        %662 = vmatmul.bf16.gmra.mxu0 %v262
        %v663 = vpop.f32.mrf.mxu0
        %v664 = vadd.f32 0.0, %v663
        %v665 = vpop.f32.mrf.mxu0
        %v666 = vadd.f32 0.0, %v665
        %667 = vmatmul.bf16.gmra.mxu0 %v266
        %v668 = vpop.f32.mrf.mxu0
        %v669 = vadd.f32 0.0, %v668
        %v670 = vpop.f32.mrf.mxu0
        %v671 = vadd.f32 0.0, %v670
        %672 = vdwg.mxu0
        %673 = vmatpush.bf16.msra.mxu0 %v556
        %674 = vmatpush.bf16.msra.mxu0 %v554
        %675 = vmatpush.bf16.msra.mxu0 %v552
        %676 = vmatpush.bf16.msra.mxu0 %v550
        %677 = vmatpush.bf16.msra.mxu0 %v548
        %678 = vmatpush.bf16.msra.mxu0 %v546
        %679 = vmatpush.bf16.msra.mxu0 %v544
        %680 = vmatpush.bf16.msra.mxu0 %v542
        %681 = vmatmul.bf16.gmra.mxu0 %v263
        %v682 = vpop.f32.mrf.mxu0
        %v683 = vadd.f32 %v664, %v682
        %v684 = vpop.f32.mrf.mxu0
        %v685 = vadd.f32 %v666, %v684
        %686 = vmatmul.bf16.gmra.mxu0 %v267
        %v687 = vpop.f32.mrf.mxu0
        %v688 = vadd.f32 %v669, %v687
        %v689 = vpop.f32.mrf.mxu0
        %v690 = vadd.f32 %v671, %v689
        %691 = vdwg.mxu0
        %692 = vmatpush.bf16.msra.mxu0 %v572
        %693 = vmatpush.bf16.msra.mxu0 %v570
        %694 = vmatpush.bf16.msra.mxu0 %v568
        %695 = vmatpush.bf16.msra.mxu0 %v566
        %696 = vmatpush.bf16.msra.mxu0 %v564
        %697 = vmatpush.bf16.msra.mxu0 %v562
        %698 = vmatpush.bf16.msra.mxu0 %v560
        %699 = vmatpush.bf16.msra.mxu0 %v558
        %700 = vmatmul.bf16.gmra.mxu0 %v264
        %v701 = vpop.f32.mrf.mxu0
        %v702 = vadd.f32 %v683, %v701
        %v703 = vpop.f32.mrf.mxu0
        %v704 = vadd.f32 %v685, %v703
        %705 = vmatmul.bf16.gmra.mxu0 %v268
        %v706 = vpop.f32.mrf.mxu0
        %v707 = vadd.f32 %v688, %v706
        %v708 = vpop.f32.mrf.mxu0
        %v709 = vadd.f32 %v690, %v708
        %710 = vdwg.mxu0
        %711 = vmatpush.bf16.msra.mxu0 %v588
        %712 = vmatpush.bf16.msra.mxu0 %v586
        %713 = vmatpush.bf16.msra.mxu0 %v584
        %714 = vmatpush.bf16.msra.mxu0 %v582
        %715 = vmatpush.bf16.msra.mxu0 %v580
        %716 = vmatpush.bf16.msra.mxu0 %v578
        %717 = vmatpush.bf16.msra.mxu0 %v576
        %718 = vmatpush.bf16.msra.mxu0 %v574
        %719 = vmatmul.bf16.gmra.mxu0 %v265
        %v720 = vpop.f32.mrf.mxu0
        %v721 = vadd.f32 %v702, %v720
        %v722 = vpop.f32.mrf.mxu0
        %v723 = vadd.f32 %v704, %v722
        %724 = vmatmul.bf16.gmra.mxu0 %v269
        %v725 = vpop.f32.mrf.mxu0
        %v726 = vadd.f32 %v707, %v725
        %v727 = vpop.f32.mrf.mxu0
        %v728 = vadd.f32 %v709, %v727
        %729 = vdwg.mxu0
        %730 = vmatpush.bf16.msra.mxu0 %v541
        %731 = vmatpush.bf16.msra.mxu0 %v539
        %732 = vmatpush.bf16.msra.mxu0 %v537
        %733 = vmatpush.bf16.msra.mxu0 %v535
        %734 = vmatpush.bf16.msra.mxu0 %v533
        %735 = vmatpush.bf16.msra.mxu0 %v531
        %736 = vmatpush.bf16.msra.mxu0 %v529
        %737 = vmatpush.bf16.msra.mxu0 %v527
        %738 = vmatmul.bf16.gmra.mxu0 %v262
        %v739 = vpop.f32.mrf.mxu0
        %v740 = vadd.f32 0.0, %v739
        %v741 = vpop.f32.mrf.mxu0
        %v742 = vadd.f32 0.0, %v741
        %743 = vmatmul.bf16.gmra.mxu0 %v266
        %v744 = vpop.f32.mrf.mxu0
        %v745 = vadd.f32 0.0, %v744
        %v746 = vpop.f32.mrf.mxu0
        %v747 = vadd.f32 0.0, %v746
        %748 = vdwg.mxu0
        %749 = vmatpush.bf16.msra.mxu0 %v557
        %750 = vmatpush.bf16.msra.mxu0 %v555
        %751 = vmatpush.bf16.msra.mxu0 %v553
        %752 = vmatpush.bf16.msra.mxu0 %v551
        %753 = vmatpush.bf16.msra.mxu0 %v549
        %754 = vmatpush.bf16.msra.mxu0 %v547
        %755 = vmatpush.bf16.msra.mxu0 %v545
        %756 = vmatpush.bf16.msra.mxu0 %v543
        %757 = vmatmul.bf16.gmra.mxu0 %v263
        %v758 = vpop.f32.mrf.mxu0
        %v759 = vadd.f32 %v740, %v758
        %v760 = vpop.f32.mrf.mxu0
        %v761 = vadd.f32 %v742, %v760
        %762 = vmatmul.bf16.gmra.mxu0 %v267
        %v763 = vpop.f32.mrf.mxu0
        %v764 = vadd.f32 %v745, %v763
        %v765 = vpop.f32.mrf.mxu0
        %v766 = vadd.f32 %v747, %v765
        %767 = vdwg.mxu0
        %768 = vmatpush.bf16.msra.mxu0 %v573
        %769 = vmatpush.bf16.msra.mxu0 %v571
        %770 = vmatpush.bf16.msra.mxu0 %v569
        %771 = vmatpush.bf16.msra.mxu0 %v567
        %772 = vmatpush.bf16.msra.mxu0 %v565
        %773 = vmatpush.bf16.msra.mxu0 %v563
        %774 = vmatpush.bf16.msra.mxu0 %v561
        %775 = vmatpush.bf16.msra.mxu0 %v559
        %776 = vmatmul.bf16.gmra.mxu0 %v264
        %v777 = vpop.f32.mrf.mxu0
        %v778 = vadd.f32 %v759, %v777
        %v779 = vpop.f32.mrf.mxu0
        %v780 = vadd.f32 %v761, %v779
        %781 = vmatmul.bf16.gmra.mxu0 %v268
        %v782 = vpop.f32.mrf.mxu0
        %v783 = vadd.f32 %v764, %v782
        %v784 = vpop.f32.mrf.mxu0
        %v785 = vadd.f32 %v766, %v784
        %786 = vdwg.mxu0
        %787 = vmatpush.bf16.msra.mxu0 %v589
        %788 = vmatpush.bf16.msra.mxu0 %v587
        %789 = vmatpush.bf16.msra.mxu0 %v585
        %790 = vmatpush.bf16.msra.mxu0 %v583
        %791 = vmatpush.bf16.msra.mxu0 %v581
        %792 = vmatpush.bf16.msra.mxu0 %v579
        %793 = vmatpush.bf16.msra.mxu0 %v577
        %794 = vmatpush.bf16.msra.mxu0 %v575
        %795 = vmatmul.bf16.gmra.mxu0 %v265
        %v796 = vpop.f32.mrf.mxu0
        %v797 = vadd.f32 %v778, %v796
        %v798 = vpop.f32.mrf.mxu0
        %v799 = vadd.f32 %v780, %v798
        %800 = vmatmul.bf16.gmra.mxu0 %v269
        %v801 = vpop.f32.mrf.mxu0
        %v802 = vadd.f32 %v783, %v801
        %v803 = vpop.f32.mrf.mxu0
        %v804 = vadd.f32 %v785, %v803
        %805 = vdwg.mxu0
        %v806 = vadd.f32 %v238, %v721
        %v807 = vadd.f32 %v239, %v797
        %v808 = vadd.f32 %v240, %v723
        %v809 = vadd.f32 %v241, %v799
        %v810 = vadd.f32 %v242, %v726
        %v811 = vadd.f32 %v243, %v802
        %v812 = vadd.f32 %v244, %v728
        %v813 = vadd.f32 %v245, %v804
        %814 = vst [vmem:[#allocation2] sm:$0xff] %v806
        %815 = vst [vmem:[#allocation2 + $0x8] sm:$0xff] %v807
        %816 = vst [vmem:[#allocation2 + $0x10] sm:$0xff] %v808
        %817 = vst [vmem:[#allocation2 + $0x18] sm:$0xff] %v809
        %818 = vst [vmem:[#allocation2 + $0x20] sm:$0xff] %v810
        %819 = vst [vmem:[#allocation2 + $0x28] sm:$0xff] %v811
        %820 = vst [vmem:[#allocation2 + $0x30] sm:$0xff] %v812
        %821 = vst [vmem:[#allocation2 + $0x38] sm:$0xff] %v813
        // Predicated region
        $region41: #{tpu_custom_call.1} parent=27 // pred_check
          %p822 = pneg %p226
        $region42: #{tpu_custom_call.1} parent=27 // pred_check_branch
          %824 = sbr.rel (%p822) target = $region44
        $region43: #{tpu_custom_call.1} parent=27 // pred_region
          %v825 = vld [vmem:[#allocation2] sm:$0xff]
          %v826 = vld [vmem:[#allocation2 + $0x8] sm:$0xff]
          %v827 = vld [vmem:[#allocation2 + $0x10] sm:$0xff]
          %v828 = vld [vmem:[#allocation2 + $0x18] sm:$0xff]
          %v829 = vld [vmem:[#allocation2 + $0x20] sm:$0xff]
          %v830 = vld [vmem:[#allocation2 + $0x28] sm:$0xff]
          %v831 = vld [vmem:[#allocation2 + $0x30] sm:$0xff]
          %v832 = vld [vmem:[#allocation2 + $0x38] sm:$0xff]
          %833 = vst [vmem:[%s219] sm:$0xff] %v825
          %834 = vst [vmem:[%s219 + $0x8] sm:$0xff] %v826
          %835 = vst [vmem:[%s219 + $0x10] sm:$0xff] %v827
          %836 = vst [vmem:[%s219 + $0x18] sm:$0xff] %v828
          %837 = vst [vmem:[%s219 + $0x20] sm:$0xff] %v829
          %838 = vst [vmem:[%s219 + $0x28] sm:$0xff] %v830
          %839 = vst [vmem:[%s219 + $0x30] sm:$0xff] %v831
          %840 = vst [vmem:[%s219 + $0x38] sm:$0xff] %v832
        $region44: #{tpu_custom_call.1} parent=27 // pred_fallthru
          _
        %s841 = sand.u32 %s105, 1
        %s842 = scalar_lea.sflag [#allocation5], %s841
        %s843 = sand.u32 %s105, 1
        %s844 = smul.addr %s843, 64
        %s845 = scalar_lea.vmem [#allocation8], %s844
        // Predicated region
        $region45: #{tpu_custom_call.1} parent=27 // pred_check
          %p846 = pneg %p115
        $region46: #{tpu_custom_call.1} parent=27 // pred_check_branch
          %848 = sbr.rel (%p846) target = $region48
        $region47: #{tpu_custom_call.1} parent=27 // pred_region
          %s849 = smul.u32 4, %s25
          %s850 = smul.u32 2, %s26
          %852 = vsyncadd %s842, 0
          %s853 = smul.addr %s849, 8
          %s854 = sadd.s32 %s850, %s853
          %s855 = smul.addr %s854, 8
          %s856 = scalar_lea.hbm %s2, %s855
          %s857 = sshll.u32 %s845, 4
          %s858 = int_to_ptr.vmem [resolvable:$true] %s857
          %s859 = sshll.u32 %s856, 4
          %s860 = int_to_ptr.hbm [resolvable:$true] %s859
          %865 = dma.vmem_to_hbm [thread:$0]  %s858, 1024, %s860, %s842, 256, 1024, 16
        $region48: #{tpu_custom_call.1} parent=27 // pred_fallthru
          _
      $region28: #{tpu_custom_call.1} parent=5 // pred_fallthru
        _
      %p866 = scmp.le.s32.totalorder 2, %s15
      // Predicated region
      $region49: #{tpu_custom_call.1} parent=5 // pred_check
        %p867 = pneg %p866
      $region50: #{tpu_custom_call.1} parent=5 // pred_check_branch
        %869 = sbr.rel (%p867) target = $region52
      $region51: #{tpu_custom_call.1} parent=5 // pred_region
        %s870 = ssub.s32 %s15, 2
        // Predicated region
        $region53: #{tpu_custom_call.1} parent=51 // pred_check
          %p871 = pneg %p121
        $region54: #{tpu_custom_call.1} parent=51 // pred_check_branch
          %873 = sbr.rel (%p871) target = $region56
        $region55: #{tpu_custom_call.1} parent=51 // pred_region
          %s874 = sand.u32 %s106, 1
          %s875 = scalar_lea.sflag [#allocation5], %s874
          %s876 = sand.u32 %s106, 1
          %s877 = smul.addr %s876, 64
          %s878 = scalar_lea.vmem [#allocation8], %s877
          %880 = dma.done %s875, 1024
        $region56: #{tpu_custom_call.1} parent=51 // pred_fallthru
          _
      $region52: #{tpu_custom_call.1} parent=5 // pred_fallthru
        _
    $region6: #{tpu_custom_call.1} parent=1 // loop_footer
      %s19 = sadd.s32 1, %s15
    $region7: #{tpu_custom_call.1} parent=1 // loop_footer_branch
      %14 = sbr.rel target = $region3
    $region8: #{tpu_custom_call.1} parent=1 // loop_exit
      _
    %881 = vsyncpa [#allocation4], 1
    %s882 = scalar_lea.sflag [#allocation4], 1
    %883 = vsyncpa %s882, 1
    %884 = vsyncpa [#allocation7], 1
    %s885 = scalar_lea.sflag [#allocation7], 1
    %886 = vsyncpa %s885, 1
    %887 = vsyncpa [#allocation5], 1
    %s888 = scalar_lea.sflag [#allocation5], 1
    %889 = vsyncpa %s888, 1

</llo_original>
